<compile_context>
chip_gen: v6e
topology: v6e:2x2x1
jax: 0.10.0
libtpu: 0.0.40
codegen_flags: <defaults>
</compile_context>

<pallas_src>
import jax
import jax.numpy as jnp
import numpy as np
from jax.experimental import pallas as pl
from jax.experimental.pallas import tpu as pltpu

EPS = 1e-5


# --------------------------------------------------------------------------- #
# Host-side weight preprocessing (pure numpy, call ONCE, reuse across forwards)
# --------------------------------------------------------------------------- #
def prepare_params(w1_oihw, g1, b1, w2_oihw, g2, b2, N, W):
    def banded(w_oihw):
        # Fold a 3x3 / stride-1 / pad-1 conv into 3 banded (N*W*Ci, N*W*Co)
        # matmuls (one per kernel row kh).  The W zero-padding is folded into
        # the band: out-of-range taps are simply dropped, so the conv LHS is
        # the unpadded lane slab and K = N*W*Ci (= 128 here, one MXU tile).
        w = np.asarray(w_oihw, np.float32)              # (Co, Ci, 3, 3)
        Co, Ci = w.shape[0], w.shape[1]
        band = np.zeros((3, W * Ci, W * Co), np.float32)
        for kh in range(3):
            for w_out in range(W):
                for kw in range(3):
                    w_in = w_out + kw - 1               # pad = 1
                    if 0 <= w_in < W:
                        band[kh,
                             w_in * Ci:(w_in + 1) * Ci,
                             w_out * Co:(w_out + 1) * Co] = w[:, :, kh, kw].T
        mats = np.zeros((3, N * W * Ci, N * W * Co), np.float32)
        for n in range(N):                              # block-diagonal over n
            mats[:,
                 n * W * Ci:(n + 1) * W * Ci,
                 n * W * Co:(n + 1) * W * Co] = band
        return jnp.asarray(mats, jnp.bfloat16)          # bf16 MXU operand

    def tile(v):
        return np.tile(np.asarray(v, np.float32), N * W)

    affine = jnp.asarray(np.stack([tile(g1), tile(b1), tile(g2), tile(b2)]))  # (4, L)
    return banded(w1_oihw), banded(w2_oihw), affine


# --------------------------------------------------------------------------- #
# Forward pass
# --------------------------------------------------------------------------- #
def inv_basic_block(x_nchw, b1m, b2m, affine):
    """PyTorch NCHW in, NCHW out.  b1m/b2m/affine come from prepare_params()."""
    N, C, H, W = x_nchw.shape
    f32 = jnp.float32
    L = N * W * C                      # fused lane width (= 128 here)
    P = b1m.shape[2] // (N * W)
    assert P == C, "residual add requires inplanes == planes when upsample is None"
    assert (L // C) & ((L // C) - 1) == 0, \
        "N*W must be a power of two for the lane roll-reduce"
    inv_cnt = 1.0 / float(N * H * W)   # biased variance, training-mode BN

    # activation layout: row = h, lane = n*(W*C) + w*C + c  (minor dim = L = 128)
    x_f = jnp.transpose(x_nchw, (2, 0, 3, 1)).reshape(H, L).astype(f32)

    def kernel(x_ref, b1_ref, b2_ref, aff_ref, o_ref, pad_ref):

        def conv3x3(b_ref):
            # 3 MXU matmuls (bf16 operands, f32 accumulation); K = L = 128.
            acc = jnp.dot(pad_ref[0:H, :], b_ref[0], preferred_element_type=f32)
            for kh in range(1, 3):
                acc = acc + jnp.dot(pad_ref[kh:kh + H, :], b_ref[kh],
                                    preferred_element_type=f32)
            return acc

        def channel_reduce(v):
            # exact-f32 reduce of the fused (n, w) lane groups (stride-C residue
            # classes), broadcast back to every lane, via an XLU roll butterfly.
            shift = C
            while shift < L:
                v = v + pltpu.roll(v, shift=shift, axis=1)
                shift *= 2
            return v

        def batchnorm(y, idx):
            g = aff_ref[2 * idx:2 * idx + 1, :]
            b = aff_ref[2 * idx + 1:2 * idx + 2, :]
            mean = channel_reduce(jnp.sum(y, axis=0, keepdims=True)) * inv_cnt
            d = y - mean
            var = channel_reduce(jnp.sum(d * d, axis=0, keepdims=True)) * inv_cnt
            scale = g * jax.lax.rsqrt(var + EPS)
            return d * scale + b

        # zero the two halo rows ONCE; both convs share them (interior is
        # fully overwritten each time, the halo never is).
        pad_ref[0:1, :] = jnp.zeros((1, L), jnp.bfloat16)
        pad_ref[H + 1:H + 2, :] = jnp.zeros((1, L), jnp.bfloat16)

        # conv1 -> bn1 -> relu   (single unmasked full-lane interior store)
        pad_ref[1:H + 1, :] = x_ref[...].astype(jnp.bfloat16)
        h1 = jnp.maximum(batchnorm(conv3x3(b1_ref), 0), 0.0)

        # conv2 -> bn2  (same scratch, halo rows still zero)
        pad_ref[1:H + 1, :] = h1.astype(jnp.bfloat16)
        h2 = batchnorm(conv3x3(b2_ref), 1)

        # residual add (upsample is None) + final relu; x re-loaded here so its
        # live range does not span the whole kernel.
        o_ref[...] = jnp.maximum(h2 + x_ref[...], 0.0)

    def full(shape):
        return pl.BlockSpec(shape, lambda i, s=shape: (0,) * len(s))

    # TODO(synk): at production ResNet widths, the dense banded formulation does
    # not scale (density ~3/(N*W), constants grow quadratically, v7x VMEM is
    # 64 MiB): switch to NHWC with C on lanes + a 9-tap shifted-slice
    # contraction, tile H/N on a "parallel" leading grid axis with a two-pass BN
    # so both v7x TensorCores split the work, and set vmem_limit_bytes.
    out_2d = pl.pallas_call(
        kernel,
        out_shape=jax.ShapeDtypeStruct((H, L), f32),
        grid=(1,),
        in_specs=[full(x_f.shape), full(b1m.shape), full(b2m.shape),
                  full(affine.shape)],
        out_specs=full((H, L)),
        scratch_shapes=[pltpu.VMEM((H + 2, L), jnp.bfloat16)],  # single reused slab
        compiler_params=pltpu.CompilerParams(dimension_semantics=("arbitrary",)),
    )(x_f, b1m, b2m, affine)

    # lane = n*(W*P) + w*P + co  ->  NCHW
    return jnp.transpose(out_2d.reshape(H, N, W, P), (1, 3, 0, 2))


# --------------------------------------------------------------------------- #
# Pure-JAX reference of the PyTorch forward (NCHW, training-mode BN)
# --------------------------------------------------------------------------- #
def ref_forward(x, w1, g1, b1, w2, g2, b2):
    dn = ('NCHW', 'OIHW', 'NCHW')

    def conv(y, w):
        return jax.lax.conv_general_dilated(
            y, w, window_strides=(1, 1), padding=((1, 1), (1, 1)),
            dimension_numbers=dn, precision=jax.lax.Precision.HIGHEST)

    def bn(y, g, b):
        mean = jnp.mean(y, axis=(0, 2, 3), keepdims=True)
        var = jnp.mean((y - mean) ** 2, axis=(0, 2, 3), keepdims=True)
        return ((y - mean) * jax.lax.rsqrt(var + EPS)
                * g.reshape(1, -1, 1, 1) + b.reshape(1, -1, 1, 1))

    out = jnp.maximum(bn(conv(x, w1), g1, b1), 0.0)
    out = bn(conv(out, w2), g2, b2)
    return jnp.maximum(out + x, 0.0)


if __name__ == "__main__":
    N, C, H, W = 2, 4, 16, 16          # inplanes = planes = 4
    P = C

    key = jax.random.PRNGKey(0)
    kx, kw1, kw2, kg1, kb1, kg2, kb2 = jax.random.split(key, 7)

    x = jax.random.normal(kx, (N, C, H, W), jnp.float32)
    fan_in = C * 3 * 3
    w1 = jax.random.normal(kw1, (P, C, 3, 3), jnp.float32) * (1.0 / np.sqrt(fan_in))
    w2 = jax.random.normal(kw2, (P, P, 3, 3), jnp.float32) * (1.0 / np.sqrt(P * 9))
    g1 = 1.0 + 0.1 * jax.random.normal(kg1, (P,), jnp.float32)
    b1 = 0.1 * jax.random.normal(kb1, (P,), jnp.float32)
    g2 = 1.0 + 0.1 * jax.random.normal(kg2, (P,), jnp.float32)
    b2 = 0.1 * jax.random.normal(kb2, (P,), jnp.float32)

    # Weight preprocessing hoisted out of the per-call forward path (done once).
    b1m, b2m, affine = prepare_params(w1, g1, b1, w2, g2, b2, N, W)

    out = inv_basic_block(x, b1m, b2m, affine)
    out = jax.block_until_ready(out)

    ref = jax.block_until_ready(ref_forward(x, w1, g1, b1, w2, g2, b2))
    # Tolerance reflects bf16 MXU conv operands (f32 accumulation) vs the
    # f32-HIGHEST reference; BN statistics and the residual path are exact f32.
    np.testing.assert_allclose(np.asarray(out), np.asarray(ref), rtol=3e-2, atol=3e-2)

    print("KERNEL_OK")
</pallas_src>

<mosaic_0001>
module attributes {stable_mosaic.version = 11 : i64} {
  func.func @kernel(%arg0: i32, %arg1: memref<16x128xf32, #tpu.memory_space<vmem>>, %arg2: memref<3x128x128xbf16, #tpu.memory_space<vmem>>, %arg3: memref<3x128x128xbf16, #tpu.memory_space<vmem>>, %arg4: memref<4x128xf32, #tpu.memory_space<vmem>>, %arg5: memref<16x128xf32, #tpu.memory_space<vmem>>, %arg6: memref<18x128xbf16, #tpu.memory_space<vmem>>) attributes {dimension_semantics = [#tpu.dimension_semantics<arbitrary>], iteration_bounds = array<i64: 1>, scalar_prefetch = 0 : i64, scratch_operands = 1 : i64, tpu.core_type = #tpu.core_type<tc>, window_params = [{pipeline_mode = #tpu.pipeline_mode<synchronous>, transform_indices = @transform_0, window_bounds = array<i64: 16, 128>}, {pipeline_mode = #tpu.pipeline_mode<synchronous>, transform_indices = @transform_1, window_bounds = array<i64: 3, 128, 128>}, {pipeline_mode = #tpu.pipeline_mode<synchronous>, transform_indices = @transform_2, window_bounds = array<i64: 3, 128, 128>}, {pipeline_mode = #tpu.pipeline_mode<synchronous>, transform_indices = @transform_3, window_bounds = array<i64: 4, 128>}, {pipeline_mode = #tpu.pipeline_mode<synchronous>, transform_indices = @transform_4, window_bounds = array<i64: 16, 128>}]} {
    %cst = arith.constant 0.000000e+00 : bf16
    %0 = vector.broadcast %cst : bf16 to vector<1x128xbf16>
    %c0 = arith.constant 0 : index
    %c0_0 = arith.constant 0 : index
    %1 = vector.load %arg6[%c0, %c0_0] : memref<18x128xbf16, #tpu.memory_space<vmem>>, vector<1x128xbf16>
    tpu.vector_store %arg6[%c0, %c0_0], %0 {strides = array<i32>} : memref<18x128xbf16, #tpu.memory_space<vmem>>, vector<1x128xbf16>,
    %cst_1 = arith.constant 0.000000e+00 : bf16
    %2 = vector.broadcast %cst_1 : bf16 to vector<1x128xbf16>
    %c17 = arith.constant 17 : index
    %c0_2 = arith.constant 0 : index
    %3 = vector.load %arg6[%c17, %c0_2] : memref<18x128xbf16, #tpu.memory_space<vmem>>, vector<1x128xbf16>
    tpu.vector_store %arg6[%c17, %c0_2], %2 {strides = array<i32>} : memref<18x128xbf16, #tpu.memory_space<vmem>>, vector<1x128xbf16>,
    %c0_3 = arith.constant 0 : index
    %c0_4 = arith.constant 0 : index
    %4 = vector.load %arg1[%c0_3, %c0_4] : memref<16x128xf32, #tpu.memory_space<vmem>>, vector<16x128xf32>
    %5 = arith.truncf %4 : vector<16x128xf32> to vector<16x128xbf16>
    %c1 = arith.constant 1 : index
    %c0_5 = arith.constant 0 : index
    %6 = vector.load %arg6[%c1, %c0_5] : memref<18x128xbf16, #tpu.memory_space<vmem>>, vector<16x128xbf16>
    tpu.vector_store %arg6[%c1, %c0_5], %5 {strides = array<i32>} : memref<18x128xbf16, #tpu.memory_space<vmem>>, vector<16x128xbf16>,
    %c0_6 = arith.constant 0 : index
    %c0_7 = arith.constant 0 : index
    %7 = vector.load %arg6[%c0_6, %c0_7] : memref<18x128xbf16, #tpu.memory_space<vmem>>, vector<16x128xbf16>
    %c0_8 = arith.constant 0 : index
    %c0_9 = arith.constant 0 : index
    %c0_10 = arith.constant 0 : index
    %8 = vector.load %arg2[%c0_8, %c0_9, %c0_10] : memref<3x128x128xbf16, #tpu.memory_space<vmem>>, vector<1x128x128xbf16>
    %9 = vector.shape_cast %8 : vector<1x128x128xbf16> to vector<128x128xbf16>
    %cst_11 = arith.constant dense<0.000000e+00> : vector<16x128xf32>
    %10 = tpu.matmul %7, %9, %cst_11 {dimension_numbers = #tpu.dot_dimension_numbers<[1], [0], [0], [1], [0, 0, 1, 1], [], []>} : vector<16x128xbf16>, vector<128x128xbf16>, vector<16x128xf32> -> vector<16x128xf32>
    %c1_12 = arith.constant 1 : index
    %c0_13 = arith.constant 0 : index
    %11 = vector.load %arg6[%c1_12, %c0_13] : memref<18x128xbf16, #tpu.memory_space<vmem>>, vector<16x128xbf16>
    %c1_14 = arith.constant 1 : index
    %c0_15 = arith.constant 0 : index
    %c0_16 = arith.constant 0 : index
    %12 = vector.load %arg2[%c1_14, %c0_15, %c0_16] : memref<3x128x128xbf16, #tpu.memory_space<vmem>>, vector<1x128x128xbf16>
    %13 = vector.shape_cast %12 : vector<1x128x128xbf16> to vector<128x128xbf16>
    %cst_17 = arith.constant dense<0.000000e+00> : vector<16x128xf32>
    %14 = tpu.matmul %11, %13, %cst_17 {dimension_numbers = #tpu.dot_dimension_numbers<[1], [0], [0], [1], [0, 0, 1, 1], [], []>} : vector<16x128xbf16>, vector<128x128xbf16>, vector<16x128xf32> -> vector<16x128xf32>
    %15 = arith.addf %10, %14 : vector<16x128xf32>
    %c2 = arith.constant 2 : index
    %c0_18 = arith.constant 0 : index
    %16 = vector.load %arg6[%c2, %c0_18] : memref<18x128xbf16, #tpu.memory_space<vmem>>, vector<16x128xbf16>
    %c2_19 = arith.constant 2 : index
    %c0_20 = arith.constant 0 : index
    %c0_21 = arith.constant 0 : index
    %17 = vector.load %arg2[%c2_19, %c0_20, %c0_21] : memref<3x128x128xbf16, #tpu.memory_space<vmem>>, vector<1x128x128xbf16>
    %18 = vector.shape_cast %17 : vector<1x128x128xbf16> to vector<128x128xbf16>
    %cst_22 = arith.constant dense<0.000000e+00> : vector<16x128xf32>
    %19 = tpu.matmul %16, %18, %cst_22 {dimension_numbers = #tpu.dot_dimension_numbers<[1], [0], [0], [1], [0, 0, 1, 1], [], []>} : vector<16x128xbf16>, vector<128x128xbf16>, vector<16x128xf32> -> vector<16x128xf32>
    %20 = arith.addf %15, %19 : vector<16x128xf32>
    %c0_23 = arith.constant 0 : index
    %c0_24 = arith.constant 0 : index
    %21 = vector.load %arg4[%c0_23, %c0_24] : memref<4x128xf32, #tpu.memory_space<vmem>>, vector<1x128xf32>
    %c1_25 = arith.constant 1 : index
    %c0_26 = arith.constant 0 : index
    %22 = vector.load %arg4[%c1_25, %c0_26] : memref<4x128xf32, #tpu.memory_space<vmem>>, vector<1x128xf32>
    %cst_27 = arith.constant dense<0.000000e+00> : vector<128xf32>
    %23 = vector.multi_reduction <add>, %20, %cst_27 [0] : vector<16x128xf32> to vector<128xf32>
    %24 = vector.shape_cast %23 : vector<128xf32> to vector<1x128xf32>
    %c4_i32 = arith.constant 4 : i32
    %25 = tpu.dynamic_rotate %24 by %c4_i32 dim 1 : vector<1x128xf32>, i32 -> vector<1x128xf32>
    %26 = arith.addf %24, %25 : vector<1x128xf32>
    %c8_i32 = arith.constant 8 : i32
    %27 = tpu.dynamic_rotate %26 by %c8_i32 dim 1 : vector<1x128xf32>, i32 -> vector<1x128xf32>
    %28 = arith.addf %26, %27 : vector<1x128xf32>
    %c16_i32 = arith.constant 16 : i32
    %29 = tpu.dynamic_rotate %28 by %c16_i32 dim 1 : vector<1x128xf32>, i32 -> vector<1x128xf32>
    %30 = arith.addf %28, %29 : vector<1x128xf32>
    %c32_i32 = arith.constant 32 : i32
    %31 = tpu.dynamic_rotate %30 by %c32_i32 dim 1 : vector<1x128xf32>, i32 -> vector<1x128xf32>
    %32 = arith.addf %30, %31 : vector<1x128xf32>
    %c64_i32 = arith.constant 64 : i32
    %33 = tpu.dynamic_rotate %32 by %c64_i32 dim 1 : vector<1x128xf32>, i32 -> vector<1x128xf32>
    %34 = arith.addf %32, %33 : vector<1x128xf32>
    %cst_28 = arith.constant 0.001953125 : f32
    %35 = vector.broadcast %cst_28 : f32 to vector<1x128xf32>
    %36 = arith.mulf %34, %35 : vector<1x128xf32>
    %37 = vector.broadcast %36 : vector<1x128xf32> to vector<16x128xf32>
    %38 = arith.subf %20, %37 : vector<16x128xf32>
    %39 = arith.mulf %38, %38 : vector<16x128xf32>
    %cst_29 = arith.constant dense<0.000000e+00> : vector<128xf32>
    %40 = vector.multi_reduction <add>, %39, %cst_29 [0] : vector<16x128xf32> to vector<128xf32>
    %41 = vector.shape_cast %40 : vector<128xf32> to vector<1x128xf32>
    %c4_i32_30 = arith.constant 4 : i32
    %42 = tpu.dynamic_rotate %41 by %c4_i32_30 dim 1 : vector<1x128xf32>, i32 -> vector<1x128xf32>
    %43 = arith.addf %41, %42 : vector<1x128xf32>
    %c8_i32_31 = arith.constant 8 : i32
    %44 = tpu.dynamic_rotate %43 by %c8_i32_31 dim 1 : vector<1x128xf32>, i32 -> vector<1x128xf32>
    %45 = arith.addf %43, %44 : vector<1x128xf32>
    %c16_i32_32 = arith.constant 16 : i32
    %46 = tpu.dynamic_rotate %45 by %c16_i32_32 dim 1 : vector<1x128xf32>, i32 -> vector<1x128xf32>
    %47 = arith.addf %45, %46 : vector<1x128xf32>
    %c32_i32_33 = arith.constant 32 : i32
    %48 = tpu.dynamic_rotate %47 by %c32_i32_33 dim 1 : vector<1x128xf32>, i32 -> vector<1x128xf32>
    %49 = arith.addf %47, %48 : vector<1x128xf32>
    %c64_i32_34 = arith.constant 64 : i32
    %50 = tpu.dynamic_rotate %49 by %c64_i32_34 dim 1 : vector<1x128xf32>, i32 -> vector<1x128xf32>
    %51 = arith.addf %49, %50 : vector<1x128xf32>
    %cst_35 = arith.constant 0.001953125 : f32
    %52 = vector.broadcast %cst_35 : f32 to vector<1x128xf32>
    %53 = arith.mulf %51, %52 : vector<1x128xf32>
    %cst_36 = arith.constant 9.99999974E-6 : f32
    %54 = vector.broadcast %cst_36 : f32 to vector<1x128xf32>
    %55 = arith.addf %53, %54 : vector<1x128xf32>
    %56 = math.rsqrt %55 : vector<1x128xf32>
    %57 = arith.mulf %21, %56 : vector<1x128xf32>
    %58 = vector.broadcast %57 : vector<1x128xf32> to vector<16x128xf32>
    %59 = arith.mulf %38, %58 : vector<16x128xf32>
    %60 = vector.broadcast %22 : vector<1x128xf32> to vector<16x128xf32>
    %61 = arith.addf %59, %60 : vector<16x128xf32>
    %cst_37 = arith.constant 0.000000e+00 : f32
    %62 = vector.broadcast %cst_37 : f32 to vector<16x128xf32>
    %63 = arith.maximumf %61, %62 : vector<16x128xf32>
    %64 = arith.truncf %63 : vector<16x128xf32> to vector<16x128xbf16>
    %c1_38 = arith.constant 1 : index
    %c0_39 = arith.constant 0 : index
    %65 = vector.load %arg6[%c1_38, %c0_39] : memref<18x128xbf16, #tpu.memory_space<vmem>>, vector<16x128xbf16>
    tpu.vector_store %arg6[%c1_38, %c0_39], %64 {strides = array<i32>} : memref<18x128xbf16, #tpu.memory_space<vmem>>, vector<16x128xbf16>,
    %c0_40 = arith.constant 0 : index
    %c0_41 = arith.constant 0 : index
    %66 = vector.load %arg6[%c0_40, %c0_41] : memref<18x128xbf16, #tpu.memory_space<vmem>>, vector<16x128xbf16>
    %c0_42 = arith.constant 0 : index
    %c0_43 = arith.constant 0 : index
    %c0_44 = arith.constant 0 : index
    %67 = vector.load %arg3[%c0_42, %c0_43, %c0_44] : memref<3x128x128xbf16, #tpu.memory_space<vmem>>, vector<1x128x128xbf16>
    %68 = vector.shape_cast %67 : vector<1x128x128xbf16> to vector<128x128xbf16>
    %cst_45 = arith.constant dense<0.000000e+00> : vector<16x128xf32>
    %69 = tpu.matmul %66, %68, %cst_45 {dimension_numbers = #tpu.dot_dimension_numbers<[1], [0], [0], [1], [0, 0, 1, 1], [], []>} : vector<16x128xbf16>, vector<128x128xbf16>, vector<16x128xf32> -> vector<16x128xf32>
    %c1_46 = arith.constant 1 : index
    %c0_47 = arith.constant 0 : index
    %70 = vector.load %arg6[%c1_46, %c0_47] : memref<18x128xbf16, #tpu.memory_space<vmem>>, vector<16x128xbf16>
    %c1_48 = arith.constant 1 : index
    %c0_49 = arith.constant 0 : index
    %c0_50 = arith.constant 0 : index
    %71 = vector.load %arg3[%c1_48, %c0_49, %c0_50] : memref<3x128x128xbf16, #tpu.memory_space<vmem>>, vector<1x128x128xbf16>
    %72 = vector.shape_cast %71 : vector<1x128x128xbf16> to vector<128x128xbf16>
    %cst_51 = arith.constant dense<0.000000e+00> : vector<16x128xf32>
    %73 = tpu.matmul %70, %72, %cst_51 {dimension_numbers = #tpu.dot_dimension_numbers<[1], [0], [0], [1], [0, 0, 1, 1], [], []>} : vector<16x128xbf16>, vector<128x128xbf16>, vector<16x128xf32> -> vector<16x128xf32>
    %74 = arith.addf %69, %73 : vector<16x128xf32>
    %c2_52 = arith.constant 2 : index
    %c0_53 = arith.constant 0 : index
    %75 = vector.load %arg6[%c2_52, %c0_53] : memref<18x128xbf16, #tpu.memory_space<vmem>>, vector<16x128xbf16>
    %c2_54 = arith.constant 2 : index
    %c0_55 = arith.constant 0 : index
    %c0_56 = arith.constant 0 : index
    %76 = vector.load %arg3[%c2_54, %c0_55, %c0_56] : memref<3x128x128xbf16, #tpu.memory_space<vmem>>, vector<1x128x128xbf16>
    %77 = vector.shape_cast %76 : vector<1x128x128xbf16> to vector<128x128xbf16>
    %cst_57 = arith.constant dense<0.000000e+00> : vector<16x128xf32>
    %78 = tpu.matmul %75, %77, %cst_57 {dimension_numbers = #tpu.dot_dimension_numbers<[1], [0], [0], [1], [0, 0, 1, 1], [], []>} : vector<16x128xbf16>, vector<128x128xbf16>, vector<16x128xf32> -> vector<16x128xf32>
    %79 = arith.addf %74, %78 : vector<16x128xf32>
    %c2_58 = arith.constant 2 : index
    %c0_59 = arith.constant 0 : index
    %80 = vector.load %arg4[%c2_58, %c0_59] : memref<4x128xf32, #tpu.memory_space<vmem>>, vector<1x128xf32>
    %c3 = arith.constant 3 : index
    %c0_60 = arith.constant 0 : index
    %81 = vector.load %arg4[%c3, %c0_60] : memref<4x128xf32, #tpu.memory_space<vmem>>, vector<1x128xf32>
    %cst_61 = arith.constant dense<0.000000e+00> : vector<128xf32>
    %82 = vector.multi_reduction <add>, %79, %cst_61 [0] : vector<16x128xf32> to vector<128xf32>
    %83 = vector.shape_cast %82 : vector<128xf32> to vector<1x128xf32>
    %c4_i32_62 = arith.constant 4 : i32
    %84 = tpu.dynamic_rotate %83 by %c4_i32_62 dim 1 : vector<1x128xf32>, i32 -> vector<1x128xf32>
    %85 = arith.addf %83, %84 : vector<1x128xf32>
    %c8_i32_63 = arith.constant 8 : i32
    %86 = tpu.dynamic_rotate %85 by %c8_i32_63 dim 1 : vector<1x128xf32>, i32 -> vector<1x128xf32>
    %87 = arith.addf %85, %86 : vector<1x128xf32>
    %c16_i32_64 = arith.constant 16 : i32
    %88 = tpu.dynamic_rotate %87 by %c16_i32_64 dim 1 : vector<1x128xf32>, i32 -> vector<1x128xf32>
    %89 = arith.addf %87, %88 : vector<1x128xf32>
    %c32_i32_65 = arith.constant 32 : i32
    %90 = tpu.dynamic_rotate %89 by %c32_i32_65 dim 1 : vector<1x128xf32>, i32 -> vector<1x128xf32>
    %91 = arith.addf %89, %90 : vector<1x128xf32>
    %c64_i32_66 = arith.constant 64 : i32
    %92 = tpu.dynamic_rotate %91 by %c64_i32_66 dim 1 : vector<1x128xf32>, i32 -> vector<1x128xf32>
    %93 = arith.addf %91, %92 : vector<1x128xf32>
    %cst_67 = arith.constant 0.001953125 : f32
    %94 = vector.broadcast %cst_67 : f32 to vector<1x128xf32>
    %95 = arith.mulf %93, %94 : vector<1x128xf32>
    %96 = vector.broadcast %95 : vector<1x128xf32> to vector<16x128xf32>
    %97 = arith.subf %79, %96 : vector<16x128xf32>
    %98 = arith.mulf %97, %97 : vector<16x128xf32>
    %cst_68 = arith.constant dense<0.000000e+00> : vector<128xf32>
    %99 = vector.multi_reduction <add>, %98, %cst_68 [0] : vector<16x128xf32> to vector<128xf32>
    %100 = vector.shape_cast %99 : vector<128xf32> to vector<1x128xf32>
    %c4_i32_69 = arith.constant 4 : i32
    %101 = tpu.dynamic_rotate %100 by %c4_i32_69 dim 1 : vector<1x128xf32>, i32 -> vector<1x128xf32>
    %102 = arith.addf %100, %101 : vector<1x128xf32>
    %c8_i32_70 = arith.constant 8 : i32
    %103 = tpu.dynamic_rotate %102 by %c8_i32_70 dim 1 : vector<1x128xf32>, i32 -> vector<1x128xf32>
    %104 = arith.addf %102, %103 : vector<1x128xf32>
    %c16_i32_71 = arith.constant 16 : i32
    %105 = tpu.dynamic_rotate %104 by %c16_i32_71 dim 1 : vector<1x128xf32>, i32 -> vector<1x128xf32>
    %106 = arith.addf %104, %105 : vector<1x128xf32>
    %c32_i32_72 = arith.constant 32 : i32
    %107 = tpu.dynamic_rotate %106 by %c32_i32_72 dim 1 : vector<1x128xf32>, i32 -> vector<1x128xf32>
    %108 = arith.addf %106, %107 : vector<1x128xf32>
    %c64_i32_73 = arith.constant 64 : i32
    %109 = tpu.dynamic_rotate %108 by %c64_i32_73 dim 1 : vector<1x128xf32>, i32 -> vector<1x128xf32>
    %110 = arith.addf %108, %109 : vector<1x128xf32>
    %cst_74 = arith.constant 0.001953125 : f32
    %111 = vector.broadcast %cst_74 : f32 to vector<1x128xf32>
    %112 = arith.mulf %110, %111 : vector<1x128xf32>
    %cst_75 = arith.constant 9.99999974E-6 : f32
    %113 = vector.broadcast %cst_75 : f32 to vector<1x128xf32>
    %114 = arith.addf %112, %113 : vector<1x128xf32>
    %115 = math.rsqrt %114 : vector<1x128xf32>
    %116 = arith.mulf %80, %115 : vector<1x128xf32>
    %117 = vector.broadcast %116 : vector<1x128xf32> to vector<16x128xf32>
    %118 = arith.mulf %97, %117 : vector<16x128xf32>
    %119 = vector.broadcast %81 : vector<1x128xf32> to vector<16x128xf32>
    %120 = arith.addf %118, %119 : vector<16x128xf32>
    %c0_76 = arith.constant 0 : index
    %c0_77 = arith.constant 0 : index
    %121 = vector.load %arg1[%c0_76, %c0_77] : memref<16x128xf32, #tpu.memory_space<vmem>>, vector<16x128xf32>
    %122 = arith.addf %120, %121 : vector<16x128xf32>
    %cst_78 = arith.constant 0.000000e+00 : f32
    %123 = vector.broadcast %cst_78 : f32 to vector<16x128xf32>
    %124 = arith.maximumf %122, %123 : vector<16x128xf32>
    %c0_79 = arith.constant 0 : index
    %c0_80 = arith.constant 0 : index
    %125 = vector.load %arg5[%c0_79, %c0_80] : memref<16x128xf32, #tpu.memory_space<vmem>>, vector<16x128xf32>
    tpu.vector_store %arg5[%c0_79, %c0_80], %124 {strides = array<i32>} : memref<16x128xf32, #tpu.memory_space<vmem>>, vector<16x128xf32>,
    return
  }
  func.func @transform_0(%arg0: i32) -> (i32, i32) {
    %c0_i32 = arith.constant 0 : i32
    %c0_i32_0 = arith.constant 0 : i32
    %c0_i32_1 = arith.constant 0 : i32
    return %c0_i32, %c0_i32_0 : i32, i32
  }
  func.func @transform_1(%arg0: i32) -> (i32, i32, i32) {
    %c0_i32 = arith.constant 0 : i32
    %c0_i32_0 = arith.constant 0 : i32
    %c0_i32_1 = arith.constant 0 : i32
    %c0_i32_2 = arith.constant 0 : i32
    return %c0_i32, %c0_i32_0, %c0_i32_1 : i32, i32, i32
  }
  func.func @transform_2(%arg0: i32) -> (i32, i32, i32) {
    %c0_i32 = arith.constant 0 : i32
    %c0_i32_0 = arith.constant 0 : i32
    %c0_i32_1 = arith.constant 0 : i32
    %c0_i32_2 = arith.constant 0 : i32
    return %c0_i32, %c0_i32_0, %c0_i32_1 : i32, i32, i32
  }
  func.func @transform_3(%arg0: i32) -> (i32, i32) {
    %c0_i32 = arith.constant 0 : i32
    %c0_i32_0 = arith.constant 0 : i32
    %c0_i32_1 = arith.constant 0 : i32
    return %c0_i32, %c0_i32_0 : i32, i32
  }
  func.func @transform_4(%arg0: i32) -> (i32, i32) {
    %c0_i32 = arith.constant 0 : i32
    %c0_i32_0 = arith.constant 0 : i32
    %c0_i32_1 = arith.constant 0 : i32
    return %c0_i32, %c0_i32_0 : i32, i32
  }
}

</mosaic_0001>

<llo_original>
// kernel: tpu_custom_call.1
$region0: #{tpu_custom_call.1}
  #allocation0 [shape = 'u32[]', space=smem, size = 0x4, offset = 0x4, fixed_abs, tag = 'smem constant byte address 0x4 - core index']
  #allocation1 [shape = 'u32[144,128]{1,0:T(1,128)}', space=vmem, size = 0x12000, scoped, tag = 'internal scratch']
  #allocation2 [shape = 'bf16[18,128]{1,0:T(8,128)(2,1)}', space=vmem, size = 0x1800, scoped, tag = 'scratch operand']
  %s0 = inlined_call_operand.hbm [shape: f32[16,128], index: 0, kind: input, shape index: {}]
  %s1 = inlined_call_operand.hbm [shape: bf16[3,128,128], index: 1, kind: input, shape index: {}]
  %s2 = inlined_call_operand.hbm [shape: bf16[3,128,128], index: 2, kind: input, shape index: {}]
  %s3 = inlined_call_operand.vmem [shape: f32[4,128], index: 3, kind: input, shape index: {}]
  %s4 = inlined_call_operand.hbm [shape: f32[16,128], index: 4, kind: output, shape index: {}]
  %s5 = sld [smem:[#allocation0]]
  $region38: #{tpu_custom_call.1} parent=0
    _
  %s7 = ssub.s32 1, %s5
  %s8 = scalar_select 0, %s7, %s5
  $region1: #{tpu_custom_call.1} parent=0
    #allocation3 [shape = 'u8[8192]{0}', space=vmem, size = 0x2000, scoped, tag = 'input window, operand 0, single buffered']
    #allocation4 [shape = 's32[1]{0}', space=sflag, size = 0x4, scoped, tag = 'scoped memory for tpu_custom_call.1']
    #allocation5 [shape = 's32[1]{0}', space=sflag, size = 0x4, scoped, tag = 'scoped memory for tpu_custom_call.1']
    #allocation6 [shape = 'u8[98304]{0}', space=vmem, size = 0x18000, scoped, tag = 'input window, operand 1, single buffered']
    #allocation7 [shape = 's32[1]{0}', space=sflag, size = 0x4, scoped, tag = 'scoped memory for tpu_custom_call.1']
    #allocation8 [shape = 'u8[98304]{0}', space=vmem, size = 0x18000, scoped, tag = 'input window, operand 2, single buffered']
    #allocation9 [shape = 'u8[8192]{0}', space=vmem, size = 0x2000, scoped, tag = 'output window, operand 0, single buffered']
    %9 = vsyncpa [#allocation4], 0
    %10 = vsyncpa [#allocation7], 0
    %11 = vsyncpa [#allocation5], 0
    // Predicated region
    $region2: #{tpu_custom_call.1} parent=1 // pred_check
      _
    $region3: #{tpu_custom_call.1} parent=1 // pred_check_branch
      %13 = sbr.rel (0) target = $region5
    $region4: #{tpu_custom_call.1} parent=1 // pred_region
      %s15 = ssub.s32 256, 256
      %16 = vsyncadd [#allocation4], %s15
      %s17 = sshll.u32 [#allocation3], 4
      %s18 = int_to_ptr.vmem [resolvable:$true] %s17
      %23 = dma.hbm_to_vmem [thread:$0]  %s0, 256, %s18, [#allocation4], 128, 128, 8
    $region5: #{tpu_custom_call.1} parent=1 // pred_fallthru
      _
    // Predicated region
    $region6: #{tpu_custom_call.1} parent=1 // pred_check
      _
    $region7: #{tpu_custom_call.1} parent=1 // pred_check_branch
      %25 = sbr.rel (0) target = $region9
    $region8: #{tpu_custom_call.1} parent=1 // pred_region
      %s27 = ssub.s32 3072, 3072
      %28 = vsyncadd [#allocation7], %s27
      %s29 = sshll.u32 [#allocation6], 4
      %s30 = int_to_ptr.vmem [resolvable:$true] %s29
      %35 = dma.hbm_to_vmem [thread:$0]  %s1, 3072, %s30, [#allocation7], 64, 64, 4
    $region9: #{tpu_custom_call.1} parent=1 // pred_fallthru
      _
    // Predicated region
    $region10: #{tpu_custom_call.1} parent=1 // pred_check
      _
    $region11: #{tpu_custom_call.1} parent=1 // pred_check_branch
      %37 = sbr.rel (0) target = $region13
    $region12: #{tpu_custom_call.1} parent=1 // pred_region
      %s39 = ssub.s32 3072, 3072
      %40 = vsyncadd [#allocation7], %s39
      %s41 = sshll.u32 [#allocation8], 4
      %s42 = int_to_ptr.vmem [resolvable:$true] %s41
      %47 = dma.hbm_to_vmem [thread:$0]  %s2, 3072, %s42, [#allocation7], 64, 64, 4
    $region13: #{tpu_custom_call.1} parent=1 // pred_fallthru
      _
    // Predicated region
    $region14: #{tpu_custom_call.1} parent=1 // pred_check
      _
    $region15: #{tpu_custom_call.1} parent=1 // pred_check_branch
      %49 = sbr.rel (0) target = $region17
    $region16: #{tpu_custom_call.1} parent=1 // pred_region
      _
    $region17: #{tpu_custom_call.1} parent=1 // pred_fallthru
      _
    // Predicated region
    $region18: #{tpu_custom_call.1} parent=1 // pred_check
      _
    $region19: #{tpu_custom_call.1} parent=1 // pred_check_branch
      %51 = sbr.rel (0) target = $region21
    $region20: #{tpu_custom_call.1} parent=1 // pred_region
      %52 = dma.done [#allocation4], 256
    $region21: #{tpu_custom_call.1} parent=1 // pred_fallthru
      _
    // Predicated region
    $region22: #{tpu_custom_call.1} parent=1 // pred_check
      _
    $region23: #{tpu_custom_call.1} parent=1 // pred_check_branch
      %54 = sbr.rel (0) target = $region25
    $region24: #{tpu_custom_call.1} parent=1 // pred_region
      %55 = dma.done [#allocation7], 3072
    $region25: #{tpu_custom_call.1} parent=1 // pred_fallthru
      _
    // Predicated region
    $region26: #{tpu_custom_call.1} parent=1 // pred_check
      _
    $region27: #{tpu_custom_call.1} parent=1 // pred_check_branch
      %57 = sbr.rel (0) target = $region29
    $region28: #{tpu_custom_call.1} parent=1 // pred_region
      %58 = dma.done [#allocation7], 3072
    $region29: #{tpu_custom_call.1} parent=1 // pred_fallthru
      _
    %vm60 = vcmask 1040384
    %vm61 = vsmask.f32 256
    %vm62 = vmand %vm60, %vm61
    %v63 = vld [vmem:[#allocation2] sm:$0x1]
    %v64 = vsel %vm62, 0, %v63
    %65 = vst [vmem:[#allocation2] sm:$0x1] %v64
    %vm66 = vsmask.f32 7938
    %vm67 = vmand %vm60, %vm66
    %v68 = vld [vmem:[#allocation2 + $0x8] sm:$0x1]
    %v69 = vsel %vm67, 0, %v68
    %70 = vst [vmem:[#allocation2 + $0x8] sm:$0x1] %v69
    %v71 = vld [vmem:[#allocation3] sm:$0xff]
    %v72 = vld [vmem:[#allocation3 + $0x8] sm:$0xff]
    %v73 = vpack.c.bf16 %v72, %v71
    %v75 = vunpack.c.l.b16 %v73
    %v76 = vunpack.c.h.b16 %v73
    %v77 = vpack.c.b16 %v75, %v75
    %v78 = vpack.c.b16 %v76, %v76
    %vm79 = vsmask.f32 4368
    %vm80 = vmor %vm61, %vm79
    %v82 = vshrl.u32 %v77, 16
    %v84 = vrot.slane %v82, 7
    %v85 = vshll.u32 %v77, 16
    %v87 = vor.u32 %v84, %v85
    %v88 = vrot.slane %v84, 4
    %v90 = vshrl.u32 %v78, 16
    %v92 = vrot.slane %v90, 7
    %v93 = vshll.u32 %v78, 16
    %v95 = vor.u32 %v92, %v93
    %v96 = vsel %vm80, %v88, %v95
    %v97 = vrot.slane %v92, 4
    %vm101 = vcmask 1043456
    %vm102 = vmand %vm101, %vm66
    %v103 = vld [vmem:[#allocation2] sm:$0xf]
    %v104 = vsel %vm102, %v87, %v103
    %105 = vst [vmem:[#allocation2] sm:$0xf] %v104
    %106 = vst [vmem:[#allocation2 + $0x4] sm:$0xf] %v96
    %v107 = vld [vmem:[#allocation2 + $0x8] sm:$0x1]
    %v108 = vsel %vm62, %v97, %v107
    %109 = vst [vmem:[#allocation2 + $0x8] sm:$0x1] %v108
    %v110 = vld [vmem:[#allocation2] sm:$0xf]
    %v111 = vld [vmem:[#allocation2 + $0x4] sm:$0xf]
    %v112 = vld [vmem:[#allocation6] sm:$0xf]
    %v113 = vld [vmem:[#allocation6 + $0x4] sm:$0xf]
    %v114 = vld [vmem:[#allocation6 + $0x8] sm:$0xf]
    %v115 = vld [vmem:[#allocation6 + $0xc] sm:$0xf]
    %v116 = vld [vmem:[#allocation6 + $0x10] sm:$0xf]
    %v117 = vld [vmem:[#allocation6 + $0x14] sm:$0xf]
    %v118 = vld [vmem:[#allocation6 + $0x18] sm:$0xf]
    %v119 = vld [vmem:[#allocation6 + $0x1c] sm:$0xf]
    %v120 = vld [vmem:[#allocation6 + $0x20] sm:$0xf]
    %v121 = vld [vmem:[#allocation6 + $0x24] sm:$0xf]
    %v122 = vld [vmem:[#allocation6 + $0x28] sm:$0xf]
    %v123 = vld [vmem:[#allocation6 + $0x2c] sm:$0xf]
    %v124 = vld [vmem:[#allocation6 + $0x30] sm:$0xf]
    %v125 = vld [vmem:[#allocation6 + $0x34] sm:$0xf]
    %v126 = vld [vmem:[#allocation6 + $0x38] sm:$0xf]
    %v127 = vld [vmem:[#allocation6 + $0x3c] sm:$0xf]
    %v128 = vld [vmem:[#allocation2 + $0x8] sm:$0x1]
    %s129 = scalar_lea.vmem [#allocation6], 64
    %v130 = vld [vmem:[%s129] sm:$0xf]
    %v131 = vld [vmem:[%s129 + $0x4] sm:$0xf]
    %v132 = vld [vmem:[%s129 + $0x8] sm:$0xf]
    %v133 = vld [vmem:[%s129 + $0xc] sm:$0xf]
    %v134 = vld [vmem:[%s129 + $0x10] sm:$0xf]
    %v135 = vld [vmem:[%s129 + $0x14] sm:$0xf]
    %v136 = vld [vmem:[%s129 + $0x18] sm:$0xf]
    %v137 = vld [vmem:[%s129 + $0x1c] sm:$0xf]
    %v138 = vld [vmem:[%s129 + $0x20] sm:$0xf]
    %v139 = vld [vmem:[%s129 + $0x24] sm:$0xf]
    %v140 = vld [vmem:[%s129 + $0x28] sm:$0xf]
    %v141 = vld [vmem:[%s129 + $0x2c] sm:$0xf]
    %v142 = vld [vmem:[%s129 + $0x30] sm:$0xf]
    %v143 = vld [vmem:[%s129 + $0x34] sm:$0xf]
    %v144 = vld [vmem:[%s129 + $0x38] sm:$0xf]
    %v145 = vld [vmem:[%s129 + $0x3c] sm:$0xf]
    %v149 = vunpack.c.l.b16 %v110
    %v150 = vunpack.c.l.b16 %v111
    %v151 = vunpack.c.l.b16 %v128
    %v152 = vpack.c.b16 %v150, %v149
    %v153 = vpack.c.b16 %v151, %v151
    %vm154 = vsmask.f32 7424
    %v156 = vshrl.u32 %v152, 16
    %v158 = vshll.u32 %v152, 16
    %v160 = vrot.slane %v158, 1
    %v161 = vor.u32 %v156, %v160
    %v163 = vshll.u32 %v153, 16
    %v165 = vrot.slane %v163, 1
    %v166 = vsel %vm154, %v161, %v165
    %v184 = vunpack.c.l.b16 %v130
    %v185 = vunpack.c.l.b16 %v131
    %v186 = vunpack.c.l.b16 %v132
    %v187 = vunpack.c.l.b16 %v133
    %v188 = vunpack.c.l.b16 %v134
    %v189 = vunpack.c.l.b16 %v135
    %v190 = vunpack.c.l.b16 %v136
    %v191 = vunpack.c.l.b16 %v137
    %v192 = vunpack.c.l.b16 %v138
    %v193 = vunpack.c.l.b16 %v139
    %v194 = vunpack.c.l.b16 %v140
    %v195 = vunpack.c.l.b16 %v141
    %v196 = vunpack.c.l.b16 %v142
    %v197 = vunpack.c.l.b16 %v143
    %v198 = vunpack.c.l.b16 %v144
    %v199 = vunpack.c.l.b16 %v145
    %v200 = vpack.c.b16 %v185, %v184
    %v201 = vpack.c.b16 %v187, %v186
    %v202 = vpack.c.b16 %v189, %v188
    %v203 = vpack.c.b16 %v191, %v190
    %v204 = vpack.c.b16 %v193, %v192
    %v205 = vpack.c.b16 %v195, %v194
    %v206 = vpack.c.b16 %v197, %v196
    %v207 = vpack.c.b16 %v199, %v198
    %216 = vmatprep.subr.bf16.mxu0 0
    %217 = vmatpush1.bf16.msra.mxu0 %v207
    %218 = vmatprep.subr.bf16.mxu0 0
    %219 = vmatpush1.bf16.msra.mxu0 %v206
    %220 = vmatprep.subr.bf16.mxu0 0
    %221 = vmatpush1.bf16.msra.mxu0 %v205
    %222 = vmatprep.subr.bf16.mxu0 0
    %223 = vmatpush1.bf16.msra.mxu0 %v204
    %224 = vmatprep.subr.bf16.mxu0 0
    %225 = vmatpush1.bf16.msra.mxu0 %v203
    %226 = vmatprep.subr.bf16.mxu0 0
    %227 = vmatpush1.bf16.msra.mxu0 %v202
    %228 = vmatprep.subr.bf16.mxu0 0
    %229 = vmatpush1.bf16.msra.mxu0 %v201
    %230 = vmatprep.subr.bf16.mxu0 0
    %231 = vmatpush1.bf16.msra.mxu0 %v200
    %232 = vmatprep.subr.bf16.mxu0 0
    %233 = vmatpush2.bf16.msra.mxu0 0
    %234 = vmatprep.subr.bf16.mxu0 0
    %235 = vmatpush2.bf16.msra.mxu0 0
    %236 = vmatprep.subr.bf16.mxu0 0
    %237 = vmatpush2.bf16.msra.mxu0 0
    %238 = vmatprep.subr.bf16.mxu0 0
    %239 = vmatpush2.bf16.msra.mxu0 0
    %240 = vmatprep.subr.bf16.mxu0 0
    %241 = vmatpush2.bf16.msra.mxu0 0
    %242 = vmatprep.subr.bf16.mxu0 0
    %243 = vmatpush2.bf16.msra.mxu0 0
    %244 = vmatprep.subr.bf16.mxu0 0
    %245 = vmatpush2.bf16.msra.mxu0 0
    %246 = vmatprep.subr.bf16.mxu0 0
    %247 = vmatpush2.bf16.msra.mxu0 0
    %248 = vmatprep.mubr.bf16.mxu0 0
    %249 = vmatmul.mubr.bf16.gmra.mxu0 %v166
    %v250 = vpop.f32.mrf.mxu0
    %v251 = vadd.f32 0.0, %v250
    %v252 = vpop.f32.mrf.mxu0
    %v253 = vpop.f32.mrf.mxu0
    %v254 = vadd.f32 0.0, %v253
    %v255 = vpop.f32.mrf.mxu0
    %256 = vdwg.mxu0
    %v274 = vunpack.c.l.b16 %v112
    %v275 = vunpack.c.l.b16 %v113
    %v276 = vunpack.c.l.b16 %v114
    %v277 = vunpack.c.l.b16 %v115
    %v278 = vunpack.c.l.b16 %v116
    %v279 = vunpack.c.l.b16 %v117
    %v280 = vunpack.c.l.b16 %v118
    %v281 = vunpack.c.l.b16 %v119
    %v282 = vunpack.c.l.b16 %v120
    %v283 = vunpack.c.l.b16 %v121
    %v284 = vunpack.c.l.b16 %v122
    %v285 = vunpack.c.l.b16 %v123
    %v286 = vunpack.c.l.b16 %v124
    %v287 = vunpack.c.l.b16 %v125
    %v288 = vunpack.c.l.b16 %v126
    %v289 = vunpack.c.l.b16 %v127
    %v290 = vpack.c.b16 %v275, %v274
    %v291 = vpack.c.b16 %v277, %v276
    %v292 = vpack.c.b16 %v279, %v278
    %v293 = vpack.c.b16 %v281, %v280
    %v294 = vpack.c.b16 %v283, %v282
    %v295 = vpack.c.b16 %v285, %v284
    %v296 = vpack.c.b16 %v287, %v286
    %v297 = vpack.c.b16 %v289, %v288
    %306 = vmatprep.subr.bf16.mxu0 0
    %307 = vmatpush1.bf16.msra.mxu0 %v297
    %308 = vmatprep.subr.bf16.mxu0 0
    %309 = vmatpush1.bf16.msra.mxu0 %v296
    %310 = vmatprep.subr.bf16.mxu0 0
    %311 = vmatpush1.bf16.msra.mxu0 %v295
    %312 = vmatprep.subr.bf16.mxu0 0
    %313 = vmatpush1.bf16.msra.mxu0 %v294
    %314 = vmatprep.subr.bf16.mxu0 0
    %315 = vmatpush1.bf16.msra.mxu0 %v293
    %316 = vmatprep.subr.bf16.mxu0 0
    %317 = vmatpush1.bf16.msra.mxu0 %v292
    %318 = vmatprep.subr.bf16.mxu0 0
    %319 = vmatpush1.bf16.msra.mxu0 %v291
    %320 = vmatprep.subr.bf16.mxu0 0
    %321 = vmatpush1.bf16.msra.mxu0 %v290
    %322 = vmatprep.subr.bf16.mxu0 0
    %323 = vmatpush2.bf16.msra.mxu0 0
    %324 = vmatprep.subr.bf16.mxu0 0
    %325 = vmatpush2.bf16.msra.mxu0 0
    %326 = vmatprep.subr.bf16.mxu0 0
    %327 = vmatpush2.bf16.msra.mxu0 0
    %328 = vmatprep.subr.bf16.mxu0 0
    %329 = vmatpush2.bf16.msra.mxu0 0
    %330 = vmatprep.subr.bf16.mxu0 0
    %331 = vmatpush2.bf16.msra.mxu0 0
    %332 = vmatprep.subr.bf16.mxu0 0
    %333 = vmatpush2.bf16.msra.mxu0 0
    %334 = vmatprep.subr.bf16.mxu0 0
    %335 = vmatpush2.bf16.msra.mxu0 0
    %336 = vmatprep.subr.bf16.mxu0 0
    %337 = vmatpush2.bf16.msra.mxu0 0
    %338 = vmatprep.mubr.bf16.mxu0 0
    %339 = vmatmul.mubr.bf16.gmra.mxu0 %v152
    %v340 = vpop.f32.mrf.mxu0
    %v341 = vadd.f32 %v251, %v340
    %v342 = vpop.f32.mrf.mxu0
    %v343 = vpop.f32.mrf.mxu0
    %v344 = vadd.f32 %v254, %v343
    %v345 = vpop.f32.mrf.mxu0
    %346 = vdwg.mxu0
    %v347 = vld [vmem:[#allocation2] sm:$0xe]
    %s348 = scalar_lea.vmem [#allocation6], 128
    %v349 = vld [vmem:[%s348] sm:$0xf]
    %v350 = vld [vmem:[%s348 + $0x4] sm:$0xf]
    %v351 = vld [vmem:[%s348 + $0x8] sm:$0xf]
    %v352 = vld [vmem:[%s348 + $0xc] sm:$0xf]
    %v353 = vld [vmem:[%s348 + $0x10] sm:$0xf]
    %v354 = vld [vmem:[%s348 + $0x14] sm:$0xf]
    %v355 = vld [vmem:[%s348 + $0x18] sm:$0xf]
    %v356 = vld [vmem:[%s348 + $0x1c] sm:$0xf]
    %v357 = vld [vmem:[%s348 + $0x20] sm:$0xf]
    %v358 = vld [vmem:[%s348 + $0x24] sm:$0xf]
    %v359 = vld [vmem:[%s348 + $0x28] sm:$0xf]
    %v360 = vld [vmem:[%s348 + $0x2c] sm:$0xf]
    %v361 = vld [vmem:[%s348 + $0x30] sm:$0xf]
    %v362 = vld [vmem:[%s348 + $0x34] sm:$0xf]
    %v363 = vld [vmem:[%s348 + $0x38] sm:$0xf]
    %v364 = vld [vmem:[%s348 + $0x3c] sm:$0xf]
    %v366 = vunpack.c.l.b16 %v347
    %v367 = vpack.c.b16 %v150, %v366
    %vm368 = vcmask 1046528
    %v369 = vrot.slane %v367, 1
    %v370 = vrot.slane %v153, 1
    %v371 = vsel %vm368, %v369, %v370
    %v389 = vunpack.c.l.b16 %v349
    %v390 = vunpack.c.l.b16 %v350
    %v391 = vunpack.c.l.b16 %v351
    %v392 = vunpack.c.l.b16 %v352
    %v393 = vunpack.c.l.b16 %v353
    %v394 = vunpack.c.l.b16 %v354
    %v395 = vunpack.c.l.b16 %v355
    %v396 = vunpack.c.l.b16 %v356
    %v397 = vunpack.c.l.b16 %v357
    %v398 = vunpack.c.l.b16 %v358
    %v399 = vunpack.c.l.b16 %v359
    %v400 = vunpack.c.l.b16 %v360
    %v401 = vunpack.c.l.b16 %v361
    %v402 = vunpack.c.l.b16 %v362
    %v403 = vunpack.c.l.b16 %v363
    %v404 = vunpack.c.l.b16 %v364
    %v405 = vpack.c.b16 %v390, %v389
    %v406 = vpack.c.b16 %v392, %v391
    %v407 = vpack.c.b16 %v394, %v393
    %v408 = vpack.c.b16 %v396, %v395
    %v409 = vpack.c.b16 %v398, %v397
    %v410 = vpack.c.b16 %v400, %v399
    %v411 = vpack.c.b16 %v402, %v401
    %v412 = vpack.c.b16 %v404, %v403
    %421 = vmatprep.subr.bf16.mxu0 0
    %422 = vmatpush1.bf16.msra.mxu0 %v412
    %423 = vmatprep.subr.bf16.mxu0 0
    %424 = vmatpush1.bf16.msra.mxu0 %v411
    %425 = vmatprep.subr.bf16.mxu0 0
    %426 = vmatpush1.bf16.msra.mxu0 %v410
    %427 = vmatprep.subr.bf16.mxu0 0
    %428 = vmatpush1.bf16.msra.mxu0 %v409
    %429 = vmatprep.subr.bf16.mxu0 0
    %430 = vmatpush1.bf16.msra.mxu0 %v408
    %431 = vmatprep.subr.bf16.mxu0 0
    %432 = vmatpush1.bf16.msra.mxu0 %v407
    %433 = vmatprep.subr.bf16.mxu0 0
    %434 = vmatpush1.bf16.msra.mxu0 %v406
    %435 = vmatprep.subr.bf16.mxu0 0
    %436 = vmatpush1.bf16.msra.mxu0 %v405
    %437 = vmatprep.subr.bf16.mxu0 0
    %438 = vmatpush2.bf16.msra.mxu0 0
    %439 = vmatprep.subr.bf16.mxu0 0
    %440 = vmatpush2.bf16.msra.mxu0 0
    %441 = vmatprep.subr.bf16.mxu0 0
    %442 = vmatpush2.bf16.msra.mxu0 0
    %443 = vmatprep.subr.bf16.mxu0 0
    %444 = vmatpush2.bf16.msra.mxu0 0
    %445 = vmatprep.subr.bf16.mxu0 0
    %446 = vmatpush2.bf16.msra.mxu0 0
    %447 = vmatprep.subr.bf16.mxu0 0
    %448 = vmatpush2.bf16.msra.mxu0 0
    %449 = vmatprep.subr.bf16.mxu0 0
    %450 = vmatpush2.bf16.msra.mxu0 0
    %451 = vmatprep.subr.bf16.mxu0 0
    %452 = vmatpush2.bf16.msra.mxu0 0
    %453 = vmatprep.mubr.bf16.mxu0 0
    %454 = vmatmul.mubr.bf16.gmra.mxu0 %v371
    %v455 = vpop.f32.mrf.mxu0
    %v456 = vadd.f32 0.0, %v455
    %v457 = vpop.f32.mrf.mxu0
    %v458 = vpop.f32.mrf.mxu0
    %v459 = vadd.f32 0.0, %v458
    %v460 = vpop.f32.mrf.mxu0
    %461 = vdwg.mxu0
    %v462 = vadd.f32 %v341, %v456
    %v463 = vadd.f32 %v344, %v459
    %v464 = vld [vmem:[%s3] sm:$0x1]
    %v465 = vld [vmem:[%s3 + $0x1] sm:$0x1]
    %v466 = vadd.f32 %v462, %v463
    %v467 = vrot.slane %v466, 4
    %v468 = vadd.f32 %v466, %v467
    %v469 = vrot.slane %v468, 2
    %v470 = vadd.f32 %v468, %v469
    %v471 = vrot.slane %v470, 1
    %v472 = vadd.f32 %v470, %v471
    %473 = vrot.lane.b32.xlu0 %v472, 4
    %v474 = vpop.permute.xlu0 %473
    %v475 = vadd.f32 %v472, %v474
    %476 = vrot.lane.b32.xlu0 %v475, 8
    %v477 = vpop.permute.xlu0 %476
    %v478 = vadd.f32 %v475, %v477
    %479 = vrot.lane.b32.xlu0 %v478, 16
    %v480 = vpop.permute.xlu0 %479
    %v481 = vadd.f32 %v478, %v480
    %482 = vrot.lane.b32.xlu0 %v481, 32
    %v483 = vpop.permute.xlu0 %482
    %v484 = vadd.f32 %v481, %v483
    %485 = vrot.lane.b32.xlu0 %v484, 64
    %v486 = vpop.permute.xlu0 %485
    %v487 = vadd.f32 %v484, %v486
    %v488 = vmul.f32 %v487, 0.001953125
    %v489 = vlaneseq
    %v490 = vshrl.u32 %v489, 7
    %v491 = vsub.s32 0, %v490
    %v492 = vrot.slane %v488, %v491
    %v493 = vsub.f32 %v462, %v492
    %v494 = vsub.f32 %v463, %v492
    %v495 = vmul.f32 %v493, %v493
    %v496 = vmul.f32 %v494, %v494
    %v497 = vadd.f32 %v495, %v496
    %v498 = vrot.slane %v497, 4
    %v499 = vadd.f32 %v497, %v498
    %v500 = vrot.slane %v499, 2
    %v501 = vadd.f32 %v499, %v500
    %v502 = vrot.slane %v501, 1
    %v503 = vadd.f32 %v501, %v502
    %504 = vrot.lane.b32.xlu0 %v503, 4
    %v505 = vpop.permute.xlu0 %504
    %v506 = vadd.f32 %v503, %v505
    %507 = vrot.lane.b32.xlu0 %v506, 8
    %v508 = vpop.permute.xlu0 %507
    %v509 = vadd.f32 %v506, %v508
    %510 = vrot.lane.b32.xlu0 %v509, 16
    %v511 = vpop.permute.xlu0 %510
    %v512 = vadd.f32 %v509, %v511
    %513 = vrot.lane.b32.xlu0 %v512, 32
    %v514 = vpop.permute.xlu0 %513
    %v515 = vadd.f32 %v512, %v514
    %516 = vrot.lane.b32.xlu0 %v515, 64
    %v517 = vpop.permute.xlu0 %516
    %v518 = vadd.f32 %v515, %v517
    %v519 = vmul.f32 %v518, 0.001953125
    %v520 = vadd.f32 %v519, 1e-05
    %v521 = vrsqrt.pop %v520
    %v522 = vmul.f32 %v464, %v521
    %v523 = vlaneseq
    %v524 = vshrl.u32 %v523, 7
    %v525 = vsub.s32 0, %v524
    %v526 = vrot.slane %v522, %v525
    %v527 = vmul.f32 %v493, %v526
    %v528 = vmul.f32 %v494, %v526
    %v529 = vlaneseq
    %v530 = vshrl.u32 %v529, 7
    %v531 = vsub.s32 0, %v530
    %v532 = vrot.slane %v465, %v531
    %v533 = vadd.f32 %v527, %v532
    %v534 = vadd.f32 %v528, %v532
    %v535 = vmax.f32 %v533, 0.0
    %v536 = vmax.f32 %v534, 0.0
    %v537 = vpack.c.bf16 %v536, %v535
    %v539 = vunpack.c.l.b16 %v537
    %v540 = vunpack.c.h.b16 %v537
    %v541 = vpack.c.b16 %v539, %v539
    %v542 = vpack.c.b16 %v540, %v540
    %v544 = vshrl.u32 %v541, 16
    %v546 = vrot.slane %v544, 7
    %v547 = vshll.u32 %v541, 16
    %v549 = vor.u32 %v546, %v547
    %v550 = vrot.slane %v546, 4
    %v552 = vshrl.u32 %v542, 16
    %v554 = vrot.slane %v552, 7
    %v555 = vshll.u32 %v542, 16
    %v557 = vor.u32 %v554, %v555
    %v558 = vsel %vm80, %v550, %v557
    %v559 = vrot.slane %v554, 4
    %v563 = vsel %vm102, %v549, %v110
    %564 = vst [vmem:[#allocation2] sm:$0xf] %v563
    %565 = vst [vmem:[#allocation2 + $0x4] sm:$0xf] %v558
    %v566 = vld [vmem:[#allocation2 + $0x8] sm:$0x1]
    %v567 = vsel %vm62, %v559, %v566
    %568 = vst [vmem:[#allocation2 + $0x8] sm:$0x1] %v567
    %v569 = vld [vmem:[#allocation2] sm:$0xf]
    %v570 = vld [vmem:[#allocation2 + $0x4] sm:$0xf]
    %v571 = vld [vmem:[#allocation8] sm:$0xf]
    %v572 = vld [vmem:[#allocation8 + $0x4] sm:$0xf]
    %v573 = vld [vmem:[#allocation8 + $0x8] sm:$0xf]
    %v574 = vld [vmem:[#allocation8 + $0xc] sm:$0xf]
    %v575 = vld [vmem:[#allocation8 + $0x10] sm:$0xf]
    %v576 = vld [vmem:[#allocation8 + $0x14] sm:$0xf]
    %v577 = vld [vmem:[#allocation8 + $0x18] sm:$0xf]
    %v578 = vld [vmem:[#allocation8 + $0x1c] sm:$0xf]
    %v579 = vld [vmem:[#allocation8 + $0x20] sm:$0xf]
    %v580 = vld [vmem:[#allocation8 + $0x24] sm:$0xf]
    %v581 = vld [vmem:[#allocation8 + $0x28] sm:$0xf]
    %v582 = vld [vmem:[#allocation8 + $0x2c] sm:$0xf]
    %v583 = vld [vmem:[#allocation8 + $0x30] sm:$0xf]
    %v584 = vld [vmem:[#allocation8 + $0x34] sm:$0xf]
    %v585 = vld [vmem:[#allocation8 + $0x38] sm:$0xf]
    %v586 = vld [vmem:[#allocation8 + $0x3c] sm:$0xf]
    %v587 = vld [vmem:[#allocation2 + $0x8] sm:$0x1]
    %s588 = scalar_lea.vmem [#allocation8], 64
    %v589 = vld [vmem:[%s588] sm:$0xf]
    %v590 = vld [vmem:[%s588 + $0x4] sm:$0xf]
    %v591 = vld [vmem:[%s588 + $0x8] sm:$0xf]
    %v592 = vld [vmem:[%s588 + $0xc] sm:$0xf]
    %v593 = vld [vmem:[%s588 + $0x10] sm:$0xf]
    %v594 = vld [vmem:[%s588 + $0x14] sm:$0xf]
    %v595 = vld [vmem:[%s588 + $0x18] sm:$0xf]
    %v596 = vld [vmem:[%s588 + $0x1c] sm:$0xf]
    %v597 = vld [vmem:[%s588 + $0x20] sm:$0xf]
    %v598 = vld [vmem:[%s588 + $0x24] sm:$0xf]
    %v599 = vld [vmem:[%s588 + $0x28] sm:$0xf]
    %v600 = vld [vmem:[%s588 + $0x2c] sm:$0xf]
    %v601 = vld [vmem:[%s588 + $0x30] sm:$0xf]
    %v602 = vld [vmem:[%s588 + $0x34] sm:$0xf]
    %v603 = vld [vmem:[%s588 + $0x38] sm:$0xf]
    %v604 = vld [vmem:[%s588 + $0x3c] sm:$0xf]
    %v608 = vunpack.c.l.b16 %v569
    %v609 = vunpack.c.l.b16 %v570
    %v610 = vunpack.c.l.b16 %v587
    %v611 = vpack.c.b16 %v609, %v608
    %v612 = vpack.c.b16 %v610, %v610
    %v614 = vshrl.u32 %v611, 16
    %v616 = vshll.u32 %v611, 16
    %v618 = vrot.slane %v616, 1
    %v619 = vor.u32 %v614, %v618
    %v621 = vshll.u32 %v612, 16
    %v623 = vrot.slane %v621, 1
    %v624 = vsel %vm154, %v619, %v623
    %v642 = vunpack.c.l.b16 %v589
    %v643 = vunpack.c.l.b16 %v590
    %v644 = vunpack.c.l.b16 %v591
    %v645 = vunpack.c.l.b16 %v592
    %v646 = vunpack.c.l.b16 %v593
    %v647 = vunpack.c.l.b16 %v594
    %v648 = vunpack.c.l.b16 %v595
    %v649 = vunpack.c.l.b16 %v596
    %v650 = vunpack.c.l.b16 %v597
    %v651 = vunpack.c.l.b16 %v598
    %v652 = vunpack.c.l.b16 %v599
    %v653 = vunpack.c.l.b16 %v600
    %v654 = vunpack.c.l.b16 %v601
    %v655 = vunpack.c.l.b16 %v602
    %v656 = vunpack.c.l.b16 %v603
    %v657 = vunpack.c.l.b16 %v604
    %v658 = vpack.c.b16 %v643, %v642
    %v659 = vpack.c.b16 %v645, %v644
    %v660 = vpack.c.b16 %v647, %v646
    %v661 = vpack.c.b16 %v649, %v648
    %v662 = vpack.c.b16 %v651, %v650
    %v663 = vpack.c.b16 %v653, %v652
    %v664 = vpack.c.b16 %v655, %v654
    %v665 = vpack.c.b16 %v657, %v656
    %674 = vmatprep.subr.bf16.mxu0 0
    %675 = vmatpush1.bf16.msra.mxu0 %v665
    %676 = vmatprep.subr.bf16.mxu0 0
    %677 = vmatpush1.bf16.msra.mxu0 %v664
    %678 = vmatprep.subr.bf16.mxu0 0
    %679 = vmatpush1.bf16.msra.mxu0 %v663
    %680 = vmatprep.subr.bf16.mxu0 0
    %681 = vmatpush1.bf16.msra.mxu0 %v662
    %682 = vmatprep.subr.bf16.mxu0 0
    %683 = vmatpush1.bf16.msra.mxu0 %v661
    %684 = vmatprep.subr.bf16.mxu0 0
    %685 = vmatpush1.bf16.msra.mxu0 %v660
    %686 = vmatprep.subr.bf16.mxu0 0
    %687 = vmatpush1.bf16.msra.mxu0 %v659
    %688 = vmatprep.subr.bf16.mxu0 0
    %689 = vmatpush1.bf16.msra.mxu0 %v658
    %690 = vmatprep.subr.bf16.mxu0 0
    %691 = vmatpush2.bf16.msra.mxu0 0
    %692 = vmatprep.subr.bf16.mxu0 0
    %693 = vmatpush2.bf16.msra.mxu0 0
    %694 = vmatprep.subr.bf16.mxu0 0
    %695 = vmatpush2.bf16.msra.mxu0 0
    %696 = vmatprep.subr.bf16.mxu0 0
    %697 = vmatpush2.bf16.msra.mxu0 0
    %698 = vmatprep.subr.bf16.mxu0 0
    %699 = vmatpush2.bf16.msra.mxu0 0
    %700 = vmatprep.subr.bf16.mxu0 0
    %701 = vmatpush2.bf16.msra.mxu0 0
    %702 = vmatprep.subr.bf16.mxu0 0
    %703 = vmatpush2.bf16.msra.mxu0 0
    %704 = vmatprep.subr.bf16.mxu0 0
    %705 = vmatpush2.bf16.msra.mxu0 0
    %706 = vmatprep.mubr.bf16.mxu0 0
    %707 = vmatmul.mubr.bf16.gmra.mxu0 %v624
    %v708 = vpop.f32.mrf.mxu0
    %v709 = vadd.f32 0.0, %v708
    %v710 = vpop.f32.mrf.mxu0
    %v711 = vpop.f32.mrf.mxu0
    %v712 = vadd.f32 0.0, %v711
    %v713 = vpop.f32.mrf.mxu0
    %714 = vdwg.mxu0
    %v732 = vunpack.c.l.b16 %v571
    %v733 = vunpack.c.l.b16 %v572
    %v734 = vunpack.c.l.b16 %v573
    %v735 = vunpack.c.l.b16 %v574
    %v736 = vunpack.c.l.b16 %v575
    %v737 = vunpack.c.l.b16 %v576
    %v738 = vunpack.c.l.b16 %v577
    %v739 = vunpack.c.l.b16 %v578
    %v740 = vunpack.c.l.b16 %v579
    %v741 = vunpack.c.l.b16 %v580
    %v742 = vunpack.c.l.b16 %v581
    %v743 = vunpack.c.l.b16 %v582
    %v744 = vunpack.c.l.b16 %v583
    %v745 = vunpack.c.l.b16 %v584
    %v746 = vunpack.c.l.b16 %v585
    %v747 = vunpack.c.l.b16 %v586
    %v748 = vpack.c.b16 %v733, %v732
    %v749 = vpack.c.b16 %v735, %v734
    %v750 = vpack.c.b16 %v737, %v736
    %v751 = vpack.c.b16 %v739, %v738
    %v752 = vpack.c.b16 %v741, %v740
    %v753 = vpack.c.b16 %v743, %v742
    %v754 = vpack.c.b16 %v745, %v744
    %v755 = vpack.c.b16 %v747, %v746
    %764 = vmatprep.subr.bf16.mxu0 0
    %765 = vmatpush1.bf16.msra.mxu0 %v755
    %766 = vmatprep.subr.bf16.mxu0 0
    %767 = vmatpush1.bf16.msra.mxu0 %v754
    %768 = vmatprep.subr.bf16.mxu0 0
    %769 = vmatpush1.bf16.msra.mxu0 %v753
    %770 = vmatprep.subr.bf16.mxu0 0
    %771 = vmatpush1.bf16.msra.mxu0 %v752
    %772 = vmatprep.subr.bf16.mxu0 0
    %773 = vmatpush1.bf16.msra.mxu0 %v751
    %774 = vmatprep.subr.bf16.mxu0 0
    %775 = vmatpush1.bf16.msra.mxu0 %v750
    %776 = vmatprep.subr.bf16.mxu0 0
    %777 = vmatpush1.bf16.msra.mxu0 %v749
    %778 = vmatprep.subr.bf16.mxu0 0
    %779 = vmatpush1.bf16.msra.mxu0 %v748
    %780 = vmatprep.subr.bf16.mxu0 0
    %781 = vmatpush2.bf16.msra.mxu0 0
    %782 = vmatprep.subr.bf16.mxu0 0
    %783 = vmatpush2.bf16.msra.mxu0 0
    %784 = vmatprep.subr.bf16.mxu0 0
    %785 = vmatpush2.bf16.msra.mxu0 0
    %786 = vmatprep.subr.bf16.mxu0 0
    %787 = vmatpush2.bf16.msra.mxu0 0
    %788 = vmatprep.subr.bf16.mxu0 0
    %789 = vmatpush2.bf16.msra.mxu0 0
    %790 = vmatprep.subr.bf16.mxu0 0
    %791 = vmatpush2.bf16.msra.mxu0 0
    %792 = vmatprep.subr.bf16.mxu0 0
    %793 = vmatpush2.bf16.msra.mxu0 0
    %794 = vmatprep.subr.bf16.mxu0 0
    %795 = vmatpush2.bf16.msra.mxu0 0
    %796 = vmatprep.mubr.bf16.mxu0 0
    %797 = vmatmul.mubr.bf16.gmra.mxu0 %v611
    %v798 = vpop.f32.mrf.mxu0
    %v799 = vadd.f32 %v709, %v798
    %v800 = vpop.f32.mrf.mxu0
    %v801 = vpop.f32.mrf.mxu0
    %v802 = vadd.f32 %v712, %v801
    %v803 = vpop.f32.mrf.mxu0
    %804 = vdwg.mxu0
    %v805 = vld [vmem:[#allocation2] sm:$0xe]
    %s806 = scalar_lea.vmem [#allocation8], 128
    %v807 = vld [vmem:[%s806] sm:$0xf]
    %v808 = vld [vmem:[%s806 + $0x4] sm:$0xf]
    %v809 = vld [vmem:[%s806 + $0x8] sm:$0xf]
    %v810 = vld [vmem:[%s806 + $0xc] sm:$0xf]
    %v811 = vld [vmem:[%s806 + $0x10] sm:$0xf]
    %v812 = vld [vmem:[%s806 + $0x14] sm:$0xf]
    %v813 = vld [vmem:[%s806 + $0x18] sm:$0xf]
    %v814 = vld [vmem:[%s806 + $0x1c] sm:$0xf]
    %v815 = vld [vmem:[%s806 + $0x20] sm:$0xf]
    %v816 = vld [vmem:[%s806 + $0x24] sm:$0xf]
    %v817 = vld [vmem:[%s806 + $0x28] sm:$0xf]
    %v818 = vld [vmem:[%s806 + $0x2c] sm:$0xf]
    %v819 = vld [vmem:[%s806 + $0x30] sm:$0xf]
    %v820 = vld [vmem:[%s806 + $0x34] sm:$0xf]
    %v821 = vld [vmem:[%s806 + $0x38] sm:$0xf]
    %v822 = vld [vmem:[%s806 + $0x3c] sm:$0xf]
    %v824 = vunpack.c.l.b16 %v805
    %v825 = vpack.c.b16 %v609, %v824
    %v826 = vrot.slane %v825, 1
    %v827 = vrot.slane %v612, 1
    %v828 = vsel %vm368, %v826, %v827
    %v846 = vunpack.c.l.b16 %v807
    %v847 = vunpack.c.l.b16 %v808
    %v848 = vunpack.c.l.b16 %v809
    %v849 = vunpack.c.l.b16 %v810
    %v850 = vunpack.c.l.b16 %v811
    %v851 = vunpack.c.l.b16 %v812
    %v852 = vunpack.c.l.b16 %v813
    %v853 = vunpack.c.l.b16 %v814
    %v854 = vunpack.c.l.b16 %v815
    %v855 = vunpack.c.l.b16 %v816
    %v856 = vunpack.c.l.b16 %v817
    %v857 = vunpack.c.l.b16 %v818
    %v858 = vunpack.c.l.b16 %v819
    %v859 = vunpack.c.l.b16 %v820
    %v860 = vunpack.c.l.b16 %v821
    %v861 = vunpack.c.l.b16 %v822
    %v862 = vpack.c.b16 %v847, %v846
    %v863 = vpack.c.b16 %v849, %v848
    %v864 = vpack.c.b16 %v851, %v850
    %v865 = vpack.c.b16 %v853, %v852
    %v866 = vpack.c.b16 %v855, %v854
    %v867 = vpack.c.b16 %v857, %v856
    %v868 = vpack.c.b16 %v859, %v858
    %v869 = vpack.c.b16 %v861, %v860
    %878 = vmatprep.subr.bf16.mxu0 0
    %879 = vmatpush1.bf16.msra.mxu0 %v869
    %880 = vmatprep.subr.bf16.mxu0 0
    %881 = vmatpush1.bf16.msra.mxu0 %v868
    %882 = vmatprep.subr.bf16.mxu0 0
    %883 = vmatpush1.bf16.msra.mxu0 %v867
    %884 = vmatprep.subr.bf16.mxu0 0
    %885 = vmatpush1.bf16.msra.mxu0 %v866
    %886 = vmatprep.subr.bf16.mxu0 0
    %887 = vmatpush1.bf16.msra.mxu0 %v865
    %888 = vmatprep.subr.bf16.mxu0 0
    %889 = vmatpush1.bf16.msra.mxu0 %v864
    %890 = vmatprep.subr.bf16.mxu0 0
    %891 = vmatpush1.bf16.msra.mxu0 %v863
    %892 = vmatprep.subr.bf16.mxu0 0
    %893 = vmatpush1.bf16.msra.mxu0 %v862
    %894 = vmatprep.subr.bf16.mxu0 0
    %895 = vmatpush2.bf16.msra.mxu0 0
    %896 = vmatprep.subr.bf16.mxu0 0
    %897 = vmatpush2.bf16.msra.mxu0 0
    %898 = vmatprep.subr.bf16.mxu0 0
    %899 = vmatpush2.bf16.msra.mxu0 0
    %900 = vmatprep.subr.bf16.mxu0 0
    %901 = vmatpush2.bf16.msra.mxu0 0
    %902 = vmatprep.subr.bf16.mxu0 0
    %903 = vmatpush2.bf16.msra.mxu0 0
    %904 = vmatprep.subr.bf16.mxu0 0
    %905 = vmatpush2.bf16.msra.mxu0 0
    %906 = vmatprep.subr.bf16.mxu0 0
    %907 = vmatpush2.bf16.msra.mxu0 0
    %908 = vmatprep.subr.bf16.mxu0 0
    %909 = vmatpush2.bf16.msra.mxu0 0
    %910 = vmatprep.mubr.bf16.mxu0 0
    %911 = vmatmul.mubr.bf16.gmra.mxu0 %v828
    %v912 = vpop.f32.mrf.mxu0
    %v913 = vadd.f32 0.0, %v912
    %v914 = vpop.f32.mrf.mxu0
    %v915 = vpop.f32.mrf.mxu0
    %v916 = vadd.f32 0.0, %v915
    %v917 = vpop.f32.mrf.mxu0
    %918 = vdwg.mxu0
    %v919 = vadd.f32 %v799, %v913
    %v920 = vadd.f32 %v802, %v916
    %v921 = vld [vmem:[%s3 + $0x2] sm:$0x1]
    %v922 = vld [vmem:[%s3 + $0x3] sm:$0x1]
    %v923 = vadd.f32 %v919, %v920
    %v924 = vrot.slane %v923, 4
    %v925 = vadd.f32 %v923, %v924
    %v926 = vrot.slane %v925, 2
    %v927 = vadd.f32 %v925, %v926
    %v928 = vrot.slane %v927, 1
    %v929 = vadd.f32 %v927, %v928
    %930 = vrot.lane.b32.xlu0 %v929, 4
    %v931 = vpop.permute.xlu0 %930
    %v932 = vadd.f32 %v929, %v931
    %933 = vrot.lane.b32.xlu0 %v932, 8
    %v934 = vpop.permute.xlu0 %933
    %v935 = vadd.f32 %v932, %v934
    %936 = vrot.lane.b32.xlu0 %v935, 16
    %v937 = vpop.permute.xlu0 %936
    %v938 = vadd.f32 %v935, %v937
    %939 = vrot.lane.b32.xlu0 %v938, 32
    %v940 = vpop.permute.xlu0 %939
    %v941 = vadd.f32 %v938, %v940
    %942 = vrot.lane.b32.xlu0 %v941, 64
    %v943 = vpop.permute.xlu0 %942
    %v944 = vadd.f32 %v941, %v943
    %v945 = vmul.f32 %v944, 0.001953125
    %v946 = vlaneseq
    %v947 = vshrl.u32 %v946, 7
    %v948 = vsub.s32 0, %v947
    %v949 = vrot.slane %v945, %v948
    %v950 = vsub.f32 %v919, %v949
    %v951 = vsub.f32 %v920, %v949
    %v952 = vmul.f32 %v950, %v950
    %v953 = vmul.f32 %v951, %v951
    %v954 = vadd.f32 %v952, %v953
    %v955 = vrot.slane %v954, 4
    %v956 = vadd.f32 %v954, %v955
    %v957 = vrot.slane %v956, 2
    %v958 = vadd.f32 %v956, %v957
    %v959 = vrot.slane %v958, 1
    %v960 = vadd.f32 %v958, %v959
    %961 = vrot.lane.b32.xlu0 %v960, 4
    %v962 = vpop.permute.xlu0 %961
    %v963 = vadd.f32 %v960, %v962
    %964 = vrot.lane.b32.xlu0 %v963, 8
    %v965 = vpop.permute.xlu0 %964
    %v966 = vadd.f32 %v963, %v965
    %967 = vrot.lane.b32.xlu0 %v966, 16
    %v968 = vpop.permute.xlu0 %967
    %v969 = vadd.f32 %v966, %v968
    %970 = vrot.lane.b32.xlu0 %v969, 32
    %v971 = vpop.permute.xlu0 %970
    %v972 = vadd.f32 %v969, %v971
    %973 = vrot.lane.b32.xlu0 %v972, 64
    %v974 = vpop.permute.xlu0 %973
    %v975 = vadd.f32 %v972, %v974
    %v976 = vmul.f32 %v975, 0.001953125
    %v977 = vadd.f32 %v976, 1e-05
    %v978 = vrsqrt.pop %v977
    %v979 = vmul.f32 %v921, %v978
    %v980 = vlaneseq
    %v981 = vshrl.u32 %v980, 7
    %v982 = vsub.s32 0, %v981
    %v983 = vrot.slane %v979, %v982
    %v984 = vmul.f32 %v950, %v983
    %v985 = vmul.f32 %v951, %v983
    %v986 = vlaneseq
    %v987 = vshrl.u32 %v986, 7
    %v988 = vsub.s32 0, %v987
    %v989 = vrot.slane %v922, %v988
    %v990 = vadd.f32 %v984, %v989
    %v991 = vadd.f32 %v985, %v989
    %v992 = vld [vmem:[#allocation3] sm:$0xff]
    %v993 = vld [vmem:[#allocation3 + $0x8] sm:$0xff]
    %v994 = vadd.f32 %v990, %v992
    %v995 = vadd.f32 %v991, %v993
    %v996 = vmax.f32 %v994, 0.0
    %v997 = vmax.f32 %v995, 0.0
    %998 = vst [vmem:[#allocation9] sm:$0xff] %v996
    %999 = vst [vmem:[#allocation9 + $0x8] sm:$0xff] %v997
    // Predicated region
    $region30: #{tpu_custom_call.1} parent=1 // pred_check
      _
    $region31: #{tpu_custom_call.1} parent=1 // pred_check_branch
      %1001 = sbr.rel (0) target = $region33
    $region32: #{tpu_custom_call.1} parent=1 // pred_region
      %s1003 = ssub.s32 256, 256
      %1004 = vsyncadd [#allocation5], %s1003
      %s1005 = sshll.u32 [#allocation9], 4
      %s1006 = int_to_ptr.vmem [resolvable:$true] %s1005
      %1011 = dma.vmem_to_hbm [thread:$0]  %s1006, 256, %s4, [#allocation5], 128, 128, 8
    $region33: #{tpu_custom_call.1} parent=1 // pred_fallthru
      _
    // Predicated region
    $region34: #{tpu_custom_call.1} parent=1 // pred_check
      _
    $region35: #{tpu_custom_call.1} parent=1 // pred_check_branch
      %1013 = sbr.rel (0) target = $region37
    $region36: #{tpu_custom_call.1} parent=1 // pred_region
      %1014 = dma.done [#allocation5], 256
    $region37: #{tpu_custom_call.1} parent=1 // pred_fallthru
      _
    %1015 = vsyncpa [#allocation4], 1
    %1016 = vsyncpa [#allocation7], 1
    %1017 = vsyncpa [#allocation5], 1

</llo_original>
